<compile_context>
chip_gen: v5e
topology: v5e:2x2
jax: 0.10.0
libtpu: 0.0.40
codegen_flags: <defaults>
</compile_context>

<pallas_src>
import functools

import jax
import jax.numpy as jnp
from jax import lax
from jax.experimental import pallas as pl
from jax.experimental.pallas import tpu as pltpu


def _round_up(x, m):
    return ((x + m - 1) // m) * m


def _pick_block_m(n):
    """Row-block size: single block for small N, else ~16 MiB of (TM, N) slabs."""
    if n <= 512:
        return _round_up(n, 8)
    n_cols = _round_up(n, 128)
    tm = (16 << 20) // (4 * 4 * n_cols)          # ~4 live (TM, N) f32 slabs
    tm = max(128, (tm // 128) * 128)
    return min(tm, 2048, n_cols)


def _normalize_kernel(f_ref, o_ref):
    """F.normalize(features, dim=1) for one row block.

    rsqrt(max(||x||^2, 1e-24)) * x  ==  x / max(||x||, 1e-12)  (torch eps).
    Zero-padded rows map to zero (0 * rsqrt(1e-24) == 0).
    """
    f = f_ref[...].astype(jnp.float32)
    inv = lax.rsqrt(jnp.maximum(jnp.sum(f * f, axis=1, keepdims=True), 1e-24))
    o_ref[...] = (f * inv).astype(o_ref.dtype)


def _supcon_loss_kernel(fn_ref, lab_row_ref, lab_col_ref, o_ref, *,
                        temperature, n_valid, block_m):
    """One grid step = loss partial-sum for a block of `block_m` query rows.

    fn_ref:      (N_pad, D)   L2-normalized features, VMEM-resident
    lab_row_ref: (1, N_pad)   labels, lane-dense row layout (column compare)
    lab_col_ref: (block_m, 1) labels of this row block (sublane layout)
    o_ref:       (1, 1, 1)    partial sum of per-row losses for this block
    """
    n_pad = fn_ref.shape[0]
    i = pl.program_id(0)
    row0 = pl.multiple_of(i * block_m, block_m)

    fn_all = fn_ref[...]                                   # (N_pad, D), resident
    fn_rows = fn_ref[pl.ds(row0, block_m), :]              # (TM, D)

    # (TM, N_pad) similarity slab on the MXU, contracting dim 1 of both
    # operands (no explicit transpose of fn_all).
    sim = lax.dot_general(
        fn_rows, fn_all,
        dimension_numbers=(((1,), (1,)), ((), ())),
        preferred_element_type=jnp.float32) * jnp.float32(1.0 / temperature)

    # NOTE: exp without row-max subtraction matches the PyTorch reference; with
    # unit vectors and T=0.07 the max exponent is ~14.3, safe in f32.
    e = jnp.exp(sim)                                       # (TM, N_pad)

    # Boolean positive mask with fused diagonal removal.
    lab_row = lab_row_ref[...]                             # (1, N_pad)
    lab_col = lab_col_ref[...]                             # (TM, 1)
    cols = lax.broadcasted_iota(jnp.int32, (block_m, n_pad), 1)
    row_ids = row0 + lax.broadcasted_iota(jnp.int32, (block_m, 1), 0)
    keep_pos = (lab_col == lab_row) & (cols != row_ids)

    if n_valid != n_pad:
        # Zero padded columns so they contribute to neither pos nor total.
        e = jnp.where(cols < n_valid, e, 0.0)

    pos = jnp.sum(jnp.where(keep_pos, e, 0.0), axis=1, keepdims=True)  # (TM, 1)
    total = jnp.sum(e, axis=1, keepdims=True)                          # (TM, 1)
    neg = total - pos   # == sum(exp(sim) * (1 - mask)); diag included, as in torch

    loss = -jnp.log(pos / neg + 1e-8)                                  # (TM, 1)

    if n_valid != n_pad:
        # Padded rows contribute nothing to the partial sum.
        loss = jnp.where(row_ids < n_valid, loss, 0.0)

    # Per-block partial sum; the wrapper divides by the true batch size.
    o_ref[0, 0, 0] = jnp.sum(loss)


def supcon_loss(features, labels, temperature=0.07, *,
                block_m=None, use_bf16_matmul=False):
    """features: [N, D] (f32 or bf16), labels: [N] int -> scalar f32 loss."""
    n, d = features.shape
    if block_m is None:
        block_m = _pick_block_m(n)
    block_m = _round_up(max(8, min(block_m, _round_up(n, 8))), 8)
    n_pad = _round_up(n, block_m)
    grid = n_pad // block_m

    f = features                                  # native dtype; upcast in-kernel
    lab = labels.reshape(-1).astype(jnp.int32)
    if n_pad != n:
        f = jnp.pad(f, ((0, n_pad - n), (0, 0)))
        lab = jnp.pad(lab, (0, n_pad - n), constant_values=-1)

    # --- pass 1: L2-normalize once (row-block tiled, megacore-parallel) ----
    norm_dtype = jnp.bfloat16 if use_bf16_matmul else jnp.float32
    fn = pl.pallas_call(
        _normalize_kernel,
        out_shape=jax.ShapeDtypeStruct((n_pad, d), norm_dtype),
        grid=(grid,),
        in_specs=[pl.BlockSpec((block_m, d), lambda i: (i, 0))],
        out_specs=pl.BlockSpec((block_m, d), lambda i: (i, 0)),
        compiler_params=pltpu.CompilerParams(
            dimension_semantics=("parallel",)),
    )(f)

    # --- pass 2: per-row-block loss partial sums --------------------------
    lab_row = lab.reshape(1, n_pad)
    lab_col = lab.reshape(n_pad, 1)

    kernel = functools.partial(
        _supcon_loss_kernel,
        temperature=float(temperature),
        n_valid=n,
        block_m=block_m,
    )

    partial_sums = pl.pallas_call(
        kernel,
        out_shape=jax.ShapeDtypeStruct((grid, 1, 1), jnp.float32),
        grid=(grid,),
        in_specs=[
            pl.BlockSpec((n_pad, d), lambda i: (0, 0)),     # normalized feats (resident)
            pl.BlockSpec((1, n_pad), lambda i: (0, 0)),     # labels, lane-dense row
            pl.BlockSpec((block_m, 1), lambda i: (i, 0)),   # labels, row-block column
        ],
        out_specs=pl.BlockSpec((1, 1, 1), lambda i: (i, 0, 0)),
        compiler_params=pltpu.CompilerParams(
            dimension_semantics=("parallel",),
            vmem_limit_bytes=64 << 20),
    )(fn, lab_row, lab_col)

    return jnp.sum(partial_sums) / jnp.float32(n)


def _supcon_ref(features, labels, temperature=0.07):
    # Pure-JAX reference mirroring the PyTorch module exactly.
    f = features.astype(jnp.float32)
    norm = jnp.sqrt(jnp.sum(f * f, axis=1, keepdims=True))
    fn = f / jnp.maximum(norm, 1e-12)
    sim = fn @ fn.T / temperature
    lab = labels.reshape(-1, 1)
    mask = (lab == lab.T).astype(jnp.float32)
    mask = mask * (1.0 - jnp.eye(f.shape[0], dtype=jnp.float32))
    e = jnp.exp(sim)
    pos = jnp.sum(e * mask, axis=1)
    neg = jnp.sum(e * (1.0 - mask), axis=1)
    return jnp.mean(-jnp.log(pos / neg + 1e-8))


if __name__ == "__main__":
    key = jax.random.PRNGKey(0)
    kf1, kf2, kf3 = jax.random.split(key, 3)

    # Case 1: N a multiple of 8 (single block, no padding path).
    n1, d1 = 8, 32
    feats1 = jax.random.normal(kf1, (n1, d1), dtype=jnp.float32)
    labels1 = jnp.array([0, 0, 1, 1, 2, 2, 3, 3], dtype=jnp.int32)
    loss1 = supcon_loss(feats1, labels1, temperature=0.07)
    jax.block_until_ready(loss1)
    ref1 = _supcon_ref(feats1, labels1, temperature=0.07)
    assert jnp.allclose(loss1, ref1, rtol=1e-4, atol=1e-4), (loss1, ref1)

    # Case 2: N not a multiple of 8 (exercises the row/column padding masks).
    n2, d2 = 10, 32
    feats2 = jax.random.normal(kf2, (n2, d2), dtype=jnp.float32)
    labels2 = jnp.array([0, 0, 1, 1, 2, 2, 3, 3, 4, 4], dtype=jnp.int32)
    loss2 = supcon_loss(feats2, labels2, temperature=0.07)
    jax.block_until_ready(loss2)
    ref2 = _supcon_ref(feats2, labels2, temperature=0.07)
    assert jnp.allclose(loss2, ref2, rtol=1e-4, atol=1e-4), (loss2, ref2)

    # Case 3: multi-block grid (grid=3) with explicit small block_m.
    n3, d3 = 48, 32
    feats3 = jax.random.normal(kf3, (n3, d3), dtype=jnp.float32)
    labels3 = (jnp.arange(n3, dtype=jnp.int32) // 4)
    loss3 = supcon_loss(feats3, labels3, temperature=0.07, block_m=16)
    jax.block_until_ready(loss3)
    ref3 = _supcon_ref(feats3, labels3, temperature=0.07)
    assert jnp.allclose(loss3, ref3, rtol=1e-4, atol=1e-4), (loss3, ref3)

    print("KERNEL_OK")
</pallas_src>

<mosaic_0001>
module attributes {stable_mosaic.version = 11 : i64} {
  func.func @_normalize_kernel(%arg0: i32, %arg1: memref<8x32xf32, #tpu.memory_space<vmem>>, %arg2: memref<8x32xf32, #tpu.memory_space<vmem>>) attributes {dimension_semantics = [#tpu.dimension_semantics<parallel>], iteration_bounds = array<i64: 1>, scalar_prefetch = 0 : i64, scratch_operands = 0 : i64, tpu.core_type = #tpu.core_type<tc>, window_params = [{transform_indices = @transform_0, window_bounds = array<i64: 8, 32>}, {transform_indices = @transform_1, window_bounds = array<i64: 8, 32>}]} {
    %c0 = arith.constant 0 : index
    %c0_0 = arith.constant 0 : index
    %0 = vector.load %arg1[%c0, %c0_0] : memref<8x32xf32, #tpu.memory_space<vmem>>, vector<8x32xf32>
    %1 = arith.mulf %0, %0 : vector<8x32xf32>
    %cst = arith.constant dense<0.000000e+00> : vector<8xf32>
    %2 = vector.multi_reduction <add>, %1, %cst [1] : vector<8x32xf32> to vector<8xf32>
    %3 = vector.shape_cast %2 : vector<8xf32> to vector<8x1xf32>
    %cst_1 = arith.constant 1.000000e-24 : f32
    %4 = vector.broadcast %cst_1 : f32 to vector<8x1xf32>
    %5 = arith.maximumf %3, %4 : vector<8x1xf32>
    %6 = math.rsqrt %5 : vector<8x1xf32>
    %7 = vector.broadcast %6 : vector<8x1xf32> to vector<8x32xf32>
    %8 = arith.mulf %0, %7 : vector<8x32xf32>
    %c0_2 = arith.constant 0 : index
    %c0_3 = arith.constant 0 : index
    %9 = vector.load %arg2[%c0_2, %c0_3] : memref<8x32xf32, #tpu.memory_space<vmem>>, vector<8x32xf32>
    tpu.vector_store %arg2[%c0_2, %c0_3], %8 {strides = array<i32>} : memref<8x32xf32, #tpu.memory_space<vmem>>, vector<8x32xf32>,
    return
  }
  func.func @transform_0(%arg0: i32) -> (i32, i32) {
    %c0_i32 = arith.constant 0 : i32
    %c0_i32_0 = arith.constant 0 : i32
    return %arg0, %c0_i32 : i32, i32
  }
  func.func @transform_1(%arg0: i32) -> (i32, i32) {
    %c0_i32 = arith.constant 0 : i32
    %c0_i32_0 = arith.constant 0 : i32
    return %arg0, %c0_i32 : i32, i32
  }
}

</mosaic_0001>

<llo_original>
// kernel: tpu_custom_call.1
$region0: #{tpu_custom_call.1}
  #allocation0 [shape = 'u32[]', space=smem, size = 0x4, offset = 0x4, fixed_abs, tag = 'smem constant byte address 0x4 - core index']
  #allocation1 [shape = 'u32[72,128]{1,0:T(1,128)}', space=vmem, size = 0x9000, scoped, tag = 'internal scratch']
  %s0 = inlined_call_operand.hbm [shape: f32[8,32], index: 0, kind: input, shape index: {}]
  %s1 = inlined_call_operand.hbm [shape: f32[8,32], index: 1, kind: output, shape index: {}]
  %s2 = sld [smem:[#allocation0]]
  $region18: #{tpu_custom_call.1} parent=0
    _
  %s4 = ssub.s32 1, %s2
  %s5 = scalar_select 0, %s4, %s2
  $region1: #{tpu_custom_call.1} parent=0
    #allocation2 [shape = 'u8[4096]{0}', space=vmem, size = 0x1000, scoped, tag = 'input window, operand 0, single buffered']
    #allocation3 [shape = 's32[1]{0}', space=sflag, size = 0x4, scoped, tag = 'scoped memory for tpu_custom_call.1']
    #allocation4 [shape = 's32[1]{0}', space=sflag, size = 0x4, scoped, tag = 'scoped memory for tpu_custom_call.1']
    #allocation5 [shape = 'u8[4096]{0}', space=vmem, size = 0x1000, scoped, tag = 'output window, operand 0, single buffered']
    %6 = vsyncpa [#allocation3], 0
    %7 = vsyncpa [#allocation4], 0
    // Predicated region
    $region2: #{tpu_custom_call.1} parent=1 // pred_check
      _
    $region3: #{tpu_custom_call.1} parent=1 // pred_check_branch
      %9 = sbr.rel (0) target = $region5
    $region4: #{tpu_custom_call.1} parent=1 // pred_region
      %11 = vsyncadd [#allocation3], 0
      %s13 = sshll.u32 %s0, 4
      %s14 = int_to_ptr.hbm [resolvable:$true] %s13
      %s15 = sshll.u32 [#allocation2], 4
      %s16 = int_to_ptr.vmem [resolvable:$true] %s15
      %18 = dma.hbm_to_vmem [thread:$0]  %s14, 128, %s16, [#allocation3]
    $region5: #{tpu_custom_call.1} parent=1 // pred_fallthru
      _
    // Predicated region
    $region6: #{tpu_custom_call.1} parent=1 // pred_check
      _
    $region7: #{tpu_custom_call.1} parent=1 // pred_check_branch
      %20 = sbr.rel (0) target = $region9
    $region8: #{tpu_custom_call.1} parent=1 // pred_region
      %22 = dma.done [#allocation3], 128
    $region9: #{tpu_custom_call.1} parent=1 // pred_fallthru
      _
    %v23 = vld [vmem:[#allocation2] sm:$0xff]
    %v24 = vmul.f32 %v23, %v23
    %vm25 = vcmask 261120
    %v26 = vsel %vm25, %v24, 0.0
    %27 = vadd.xlane.f32.xlu0 %v26
    %v28 = vpop.xlane.xlu0 %27
    %v29 = vmax.f32 %v28, 1e-24
    %v30 = vrsqrt.pop %v29
    %v31 = vmul.f32 %v30, %v29
    %v32 = vmul.f32 %v31, %v30
    %v33 = vmul.f32 0.5, %v32
    %v34 = vsub.f32 1.5, %v33
    %v35 = vmul.f32 %v30, %v34
    %vm36 = vweird.f32 %v29
    %vm37 = vweird.f32 %v30
    %vm38 = vmor %vm36, %vm37
    %v39 = vsel %vm38, %v30, %v35
    %v40 = vmul.f32 %v23, %v39
    %41 = vst.msk [vmem:[#allocation5] sm:$0xff] %vm25, %v40
    // Predicated region
    $region10: #{tpu_custom_call.1} parent=1 // pred_check
      _
    $region11: #{tpu_custom_call.1} parent=1 // pred_check_branch
      %43 = sbr.rel (0) target = $region13
    $region12: #{tpu_custom_call.1} parent=1 // pred_region
      %45 = vsyncadd [#allocation4], 0
      %s47 = sshll.u32 [#allocation5], 4
      %s48 = int_to_ptr.vmem [resolvable:$true] %s47
      %s49 = sshll.u32 %s1, 4
      %s50 = int_to_ptr.hbm [resolvable:$true] %s49
      %52 = dma.vmem_to_hbm [thread:$0]  %s48, 128, %s50, [#allocation4]
    $region13: #{tpu_custom_call.1} parent=1 // pred_fallthru
      _
    // Predicated region
    $region14: #{tpu_custom_call.1} parent=1 // pred_check
      _
    $region15: #{tpu_custom_call.1} parent=1 // pred_check_branch
      %54 = sbr.rel (0) target = $region17
    $region16: #{tpu_custom_call.1} parent=1 // pred_region
      %56 = dma.done [#allocation4], 128
    $region17: #{tpu_custom_call.1} parent=1 // pred_fallthru
      _
    %57 = vsyncpa [#allocation3], 1
    %58 = vsyncpa [#allocation4], 1

</llo_original>
